<compile_context>
chip_gen: v6e
topology: v6e:2x2x1
jax: 0.10.0
libtpu: 0.0.40
codegen_flags: <defaults>
</compile_context>

<pallas_src>
import functools

import jax
import jax.numpy as jnp
from jax.experimental import pallas as pl
from jax.experimental.pallas import tpu as pltpu

_LANE = 128


def _sublane_tile(dtype):
    """Rows needed to fill one (sublane x 128-lane) register tile."""
    return {4: 8, 2: 16, 1: 32}[jnp.dtype(dtype).itemsize]


def _round_up(x, m):
    return (x + m - 1) // m * m


def _make_gdl_kernel(thw, nsub, hw, sps, full_steps, mask_needed):
    sub = thw // nsub

    def _accum(x, t, acc_t, acc_tx, acc_x):
        acc_t[...] += jnp.sum(t, axis=1, keepdims=True)
        acc_tx[...] += jnp.sum(t * x, axis=1, keepdims=True)
        acc_x[...] += jnp.sum(x, axis=1, keepdims=True)

    def kernel(inp_ref, targ_ref, out_ref, acc_t, acc_tx, acc_x):
        s = pl.program_id(1)
        j = pl.program_id(2)
        last = pl.num_programs(2) - 1

        @pl.when(j == 0)
        def _init():
            acc_t[...] = jnp.zeros_like(acc_t)
            acc_tx[...] = jnp.zeros_like(acc_tx)
            acc_x[...] = jnp.zeros_like(acc_x)

        bidx = s * sps + j  # logical (unclamped) spatial block index

        def _body(masked):
            # Static sub-chunks: bound f32 temporaries to a fraction of the
            # (multi-MiB) HBM block and fuse the upcast into the reduction.
            for k in range(nsub):
                lo = k * sub
                x = inp_ref[:, lo:lo + sub].astype(jnp.float32)
                t = targ_ref[:, lo:lo + sub].astype(jnp.float32)
                if masked:
                    pos = bidx * thw + lo + jax.lax.broadcasted_iota(
                        jnp.int32, (1, sub), 1)
                    valid = pos < hw
                    x = jnp.where(valid, x, 0.0)
                    t = jnp.where(valid, t, 0.0)
                _accum(x, t, acc_t, acc_tx, acc_x)

        if mask_needed:
            # Only spatial blocks reaching past H*W pay for the lane mask.
            @pl.when(bidx < full_steps)
            def _full():
                _body(False)

            @pl.when(bidx >= full_steps)
            def _tail():
                _body(True)
        else:
            _body(False)

        @pl.when(j == last)
        def _finalize():
            out_ref[0, 0, :, 0:1] = acc_t[...]
            out_ref[0, 0, :, 1:2] = acc_tx[...]
            out_ref[0, 0, :, 2:3] = acc_x[...]

    return kernel


def generalized_dice_loss(inp, targ, *, target_block_bytes=None):
    """Generalized Dice loss for NCHW `inp` (predictions) and `targ` (one-hot)."""
    assert inp.shape == targ.shape and inp.ndim == 4
    n, c, h, w = inp.shape
    hw = h * w
    total_rows = n * c

    # --- dtype handling: stream narrow dtypes as-is, upcast in-register. -----
    float_ok = {jnp.dtype(jnp.float32), jnp.dtype(jnp.bfloat16),
                jnp.dtype(jnp.float16)}
    int_ok = {jnp.dtype(jnp.int8), jnp.dtype(jnp.uint8)}
    if jnp.dtype(inp.dtype) not in float_ok:
        inp = inp.astype(jnp.float32)
    if jnp.dtype(targ.dtype) == jnp.dtype(jnp.bool_):
        targ = targ.astype(jnp.int8)              # stays 1 byte / element
    if jnp.dtype(targ.dtype) not in (float_ok | int_ok):
        targ = targ.astype(jnp.float32)

    # Free contiguous views: NCHW -> (N*C, H*W).  Spatial on the 128-wide lane
    # axis; (n, c) rows pack the sublane axis for full vreg occupancy.
    inp2 = inp.reshape(total_rows, hw)
    targ2 = targ.reshape(total_rows, hw)
    isz_i = jnp.dtype(inp2.dtype).itemsize
    isz_t = jnp.dtype(targ2.dtype).itemsize

    rows_tile = max(_sublane_tile(inp2.dtype), _sublane_tile(targ2.dtype))
    rows_blk = rows_tile if total_rows >= rows_tile else total_rows
    rb = pl.cdiv(total_rows, rows_blk)
    pad_i = _round_up(rows_blk, _sublane_tile(inp2.dtype))
    pad_t = _round_up(rows_blk, _sublane_tile(targ2.dtype))
    rows8 = _round_up(rows_blk, 8)
    per_lane = pad_i * isz_i + pad_t * isz_t       # one (inp, targ) buffer pair

    # --- VMEM budget & tile sizing (per generation, padded accounting). ------
    try:
        phys_vmem = int(pltpu.get_tpu_info().vmem_capacity_bytes)
        if not (32 * 2**20 <= phys_vmem <= 1024 * 2**20):
            phys_vmem = 64 * 2**20
    except Exception:                               # conservative fallback
        phys_vmem = 64 * 2**20                      # v7x per-core capacity
    budget = min(int(phys_vmem * 0.8), 100 * 2**20)
    vmem_limit = int(min(phys_vmem - 8 * 2**20, 100 * 2**20))

    if target_block_bytes is None:
        pair_target = budget // 4                   # x2 double-buffer = budget/2
    else:
        pair_target = int(target_block_bytes)

    def _plan(thw_req):
        if thw_req >= hw:
            thw = hw                                # single full-extent tile
        else:
            base = 8 * _LANE if thw_req >= 8 * _LANE else _LANE
            thw = max(base, thw_req // base * base)
            if thw >= hw:
                thw = hw
        total_steps = pl.cdiv(hw, thw)
        # Split spatial tiles over a second parallel axis when the row axis
        # alone cannot feed both TensorCores (v7x); harmless on 1-core chips.
        splits = 2 if (rb == 1 and total_steps >= 2) else 1
        sps = pl.cdiv(total_steps, splits)
        full_steps = hw // thw
        mask_needed = (hw % thw != 0) or (splits * sps != total_steps)
        nsub = 1
        if thw % _LANE == 0:
            g = thw // _LANE
            for cand in (8, 4, 2):
                if g % cand == 0:
                    nsub = cand
                    break
        footprint = 2 * thw * per_lane                    # double-buffered inputs
        footprint += 6 * rows8 * (thw // nsub) * 4        # f32 chunk temporaries
        return dict(thw=thw, total_steps=total_steps, splits=splits, sps=sps,
                    full_steps=full_steps, mask_needed=mask_needed, nsub=nsub,
                    footprint=footprint)

    plan = _plan(max(pair_target // max(per_lane, 1), _LANE))
    while plan["footprint"] > vmem_limit - 2 * 2**20 and plan["thw"] > _LANE:
        plan = _plan(plan["thw"] // 2)

    thw, splits, sps = plan["thw"], plan["splits"], plan["sps"]
    total_steps = plan["total_steps"]

    kernel = _make_gdl_kernel(thw, plan["nsub"], hw, sps,
                              plan["full_steps"], plan["mask_needed"])

    def in_map(r, s, j):
        # Padded (splits * sps) steps may overrun the real tile count; the
        # clamped block re-reads the last tile and is fully masked in-kernel.
        return (r, jnp.minimum(s * sps + j, total_steps - 1))

    partials = pl.pallas_call(
        kernel,
        out_shape=jax.ShapeDtypeStruct((rb, splits, rows_blk, 3), jnp.float32),
        grid_spec=pltpu.PrefetchScalarGridSpec(
            num_scalar_prefetch=0,
            grid=(rb, splits, sps),
            in_specs=[
                pl.BlockSpec((rows_blk, thw), in_map),
                pl.BlockSpec((rows_blk, thw), in_map),
            ],
            out_specs=pl.BlockSpec((1, 1, rows_blk, 3),
                                   lambda r, s, j: (r, s, 0, 0)),
            scratch_shapes=[
                pltpu.VMEM((rows_blk, 1), jnp.float32),   # sum(targ)
                pltpu.VMEM((rows_blk, 1), jnp.float32),   # sum(targ * inp)
                pltpu.VMEM((rows_blk, 1), jnp.float32),   # sum(inp)
            ],
        ),
        compiler_params=pltpu.CompilerParams(
            dimension_semantics=("parallel", "parallel", "arbitrary"),
            vmem_limit_bytes=vmem_limit,
        ),
    )(inp2, targ2)

    # Tiny O(N*C) combine + weighting (matches the PyTorch forward exactly).
    p = jnp.sum(partials, axis=1)                     # (rb, rows_blk, 3)
    p = p.reshape(rb * rows_blk, 3)[:total_rows]      # drop padded garbage rows
    p = p.reshape(n, c, 3).sum(axis=0)                # per-channel sums (C, 3)
    sum_t, sum_tx, sum_x = p[:, 0], p[:, 1], p[:, 2]
    w_ = 1.0 / (sum_t ** 2 + 1e-09)
    numerator = jnp.sum(w_ * sum_tx)
    denominator = jnp.sum(w_ * (sum_t + sum_x))
    dice = 2.0 * (numerator + 1e-09) / (denominator + 1e-09)
    return 1.0 - dice


def _reference(inp, targ):
    # Pure-JAX reference mirroring the PyTorch forward exactly.
    inp = jnp.transpose(inp.astype(jnp.float32), (0, 2, 3, 1))
    targ = jnp.transpose(targ.astype(jnp.float32), (0, 2, 3, 1))
    w = 1.0 / (jnp.sum(targ, (0, 1, 2)) ** 2 + 1e-09)
    numerator = jnp.sum(w * jnp.sum(targ * inp, (0, 1, 2)))
    denominator = jnp.sum(w * jnp.sum(targ + inp, (0, 1, 2)))
    dice = 2.0 * (numerator + 1e-09) / (denominator + 1e-09)
    return 1.0 - dice


if __name__ == "__main__":
    key = jax.random.PRNGKey(0)
    k1, k2, k3, k4, k5, k6 = jax.random.split(key, 6)

    def make_case(ka, kb, n, c, h, w, inp_dtype=jnp.float32,
                  targ_dtype=jnp.float32):
        logits = jax.random.normal(ka, (n, c, h, w), dtype=jnp.float32)
        inp = jax.nn.softmax(logits, axis=1).astype(inp_dtype)
        labels = jax.random.randint(kb, (n, h, w), 0, c)
        onehot = jax.nn.one_hot(labels, c, dtype=jnp.float32)
        targ = jnp.transpose(onehot, (0, 3, 1, 2)).astype(targ_dtype)
        return inp, targ

    # 1) Primary case from the module spec: N=2, C=4, 16x16, f32.
    inp, targ = make_case(k1, k2, 2, 4, 16, 16)
    loss = jax.block_until_ready(jax.jit(generalized_dice_loss)(inp, targ))
    assert jnp.allclose(loss, _reference(inp, targ), rtol=1e-4, atol=1e-6), (
        loss, _reference(inp, targ))

    # 2) Multi-tile spatial axis + core-split axis + tail mask (tiny tiles).
    f_small = jax.jit(functools.partial(generalized_dice_loss,
                                        target_block_bytes=2048))
    inp, targ = make_case(k3, k4, 1, 3, 30, 37)
    loss = jax.block_until_ready(f_small(inp, targ))
    assert jnp.allclose(loss, _reference(inp, targ), rtol=1e-4, atol=1e-6), (
        loss, _reference(inp, targ))

    # 3) Uneven row packing (N*C not a multiple of the sublane tile).
    inp, targ = make_case(k5, k6, 5, 2, 13, 11)
    loss = jax.block_until_ready(f_small(inp, targ))
    assert jnp.allclose(loss, _reference(inp, targ), rtol=1e-4, atol=1e-6), (
        loss, _reference(inp, targ))

    # 4) Narrow streamed dtypes: bf16 predictions + int8 one-hot targets.
    inp, targ = make_case(k1, k2, 8, 4, 16, 16, jnp.bfloat16, jnp.int8)
    loss = jax.block_until_ready(jax.jit(generalized_dice_loss)(inp, targ))
    assert jnp.allclose(loss, _reference(inp, targ), rtol=1e-4, atol=1e-6), (
        loss, _reference(inp, targ))

    print("KERNEL_OK")
</pallas_src>

<mosaic_0001>
module attributes {stable_mosaic.version = 11 : i64} {
  func.func @kernel(%arg0: i32, %arg1: i32, %arg2: i32, %arg3: memref<8x256xf32, #tpu.memory_space<vmem>>, %arg4: memref<8x256xf32, #tpu.memory_space<vmem>>, %arg5: memref<1x1x8x3xf32, #tpu.memory_space<vmem>>, %arg6: memref<8x1xf32, #tpu.memory_space<vmem>>, %arg7: memref<8x1xf32, #tpu.memory_space<vmem>>, %arg8: memref<8x1xf32, #tpu.memory_space<vmem>>) attributes {dimension_semantics = [#tpu.dimension_semantics<parallel>, #tpu.dimension_semantics<parallel>, #tpu.dimension_semantics<arbitrary>], iteration_bounds = array<i64: 1, 1, 1>, scalar_prefetch = 0 : i64, scratch_operands = 3 : i64, tpu.core_type = #tpu.core_type<tc>, window_params = [{transform_indices = @transform_0, window_bounds = array<i64: 8, 256>}, {transform_indices = @transform_1, window_bounds = array<i64: 8, 256>}, {transform_indices = @transform_2, window_bounds = array<i64: 1, 1, 8, 3>}]} {
    %c0_i32 = arith.constant 0 : i32
    %0 = arith.cmpi eq, %arg2, %c0_i32 : i32
    %1 = arith.extui %0 : i1 to i32
    %c0_i32_0 = arith.constant 0 : i32
    %2 = arith.cmpi ne, %1, %c0_i32_0 : i32
    scf.if %2 {
      %cst_38 = arith.constant 0.000000e+00 : f32
      %42 = vector.broadcast %cst_38 : f32 to vector<8x1xf32>
      %c0_39 = arith.constant 0 : index
      %c0_40 = arith.constant 0 : index
      %43 = vector.load %arg6[%c0_39, %c0_40] : memref<8x1xf32, #tpu.memory_space<vmem>>, vector<8x1xf32>
      tpu.vector_store %arg6[%c0_39, %c0_40], %42 {strides = array<i32>} : memref<8x1xf32, #tpu.memory_space<vmem>>, vector<8x1xf32>,
      %cst_41 = arith.constant 0.000000e+00 : f32
      %44 = vector.broadcast %cst_41 : f32 to vector<8x1xf32>
      %c0_42 = arith.constant 0 : index
      %c0_43 = arith.constant 0 : index
      %45 = vector.load %arg7[%c0_42, %c0_43] : memref<8x1xf32, #tpu.memory_space<vmem>>, vector<8x1xf32>
      tpu.vector_store %arg7[%c0_42, %c0_43], %44 {strides = array<i32>} : memref<8x1xf32, #tpu.memory_space<vmem>>, vector<8x1xf32>,
      %cst_44 = arith.constant 0.000000e+00 : f32
      %46 = vector.broadcast %cst_44 : f32 to vector<8x1xf32>
      %c0_45 = arith.constant 0 : index
      %c0_46 = arith.constant 0 : index
      %47 = vector.load %arg8[%c0_45, %c0_46] : memref<8x1xf32, #tpu.memory_space<vmem>>, vector<8x1xf32>
      tpu.vector_store %arg8[%c0_45, %c0_46], %46 {strides = array<i32>} : memref<8x1xf32, #tpu.memory_space<vmem>>, vector<8x1xf32>,
    } else {
    }
    %c0 = arith.constant 0 : index
    %c0_1 = arith.constant 0 : index
    %3 = vector.load %arg3[%c0, %c0_1] : memref<8x256xf32, #tpu.memory_space<vmem>>, vector<8x128xf32>
    %c0_2 = arith.constant 0 : index
    %c0_3 = arith.constant 0 : index
    %4 = vector.load %arg4[%c0_2, %c0_3] : memref<8x256xf32, #tpu.memory_space<vmem>>, vector<8x128xf32>
    %c0_4 = arith.constant 0 : index
    %c0_5 = arith.constant 0 : index
    %5 = vector.load %arg6[%c0_4, %c0_5] : memref<8x1xf32, #tpu.memory_space<vmem>>, vector<8x1xf32>
    %cst = arith.constant dense<0.000000e+00> : vector<8xf32>
    %6 = vector.multi_reduction <add>, %4, %cst [1] : vector<8x128xf32> to vector<8xf32>
    %7 = vector.shape_cast %6 : vector<8xf32> to vector<8x1xf32>
    %8 = arith.addf %5, %7 : vector<8x1xf32>
    %c0_6 = arith.constant 0 : index
    %c0_7 = arith.constant 0 : index
    %9 = vector.load %arg6[%c0_6, %c0_7] : memref<8x1xf32, #tpu.memory_space<vmem>>, vector<8x1xf32>
    tpu.vector_store %arg6[%c0_6, %c0_7], %8 {strides = array<i32>} : memref<8x1xf32, #tpu.memory_space<vmem>>, vector<8x1xf32>,
    %c0_8 = arith.constant 0 : index
    %c0_9 = arith.constant 0 : index
    %10 = vector.load %arg7[%c0_8, %c0_9] : memref<8x1xf32, #tpu.memory_space<vmem>>, vector<8x1xf32>
    %11 = arith.mulf %4, %3 : vector<8x128xf32>
    %cst_10 = arith.constant dense<0.000000e+00> : vector<8xf32>
    %12 = vector.multi_reduction <add>, %11, %cst_10 [1] : vector<8x128xf32> to vector<8xf32>
    %13 = vector.shape_cast %12 : vector<8xf32> to vector<8x1xf32>
    %14 = arith.addf %10, %13 : vector<8x1xf32>
    %c0_11 = arith.constant 0 : index
    %c0_12 = arith.constant 0 : index
    %15 = vector.load %arg7[%c0_11, %c0_12] : memref<8x1xf32, #tpu.memory_space<vmem>>, vector<8x1xf32>
    tpu.vector_store %arg7[%c0_11, %c0_12], %14 {strides = array<i32>} : memref<8x1xf32, #tpu.memory_space<vmem>>, vector<8x1xf32>,
    %c0_13 = arith.constant 0 : index
    %c0_14 = arith.constant 0 : index
    %16 = vector.load %arg8[%c0_13, %c0_14] : memref<8x1xf32, #tpu.memory_space<vmem>>, vector<8x1xf32>
    %cst_15 = arith.constant dense<0.000000e+00> : vector<8xf32>
    %17 = vector.multi_reduction <add>, %3, %cst_15 [1] : vector<8x128xf32> to vector<8xf32>
    %18 = vector.shape_cast %17 : vector<8xf32> to vector<8x1xf32>
    %19 = arith.addf %16, %18 : vector<8x1xf32>
    %c0_16 = arith.constant 0 : index
    %c0_17 = arith.constant 0 : index
    %20 = vector.load %arg8[%c0_16, %c0_17] : memref<8x1xf32, #tpu.memory_space<vmem>>, vector<8x1xf32>
    tpu.vector_store %arg8[%c0_16, %c0_17], %19 {strides = array<i32>} : memref<8x1xf32, #tpu.memory_space<vmem>>, vector<8x1xf32>,
    %c0_18 = arith.constant 0 : index
    %c128 = arith.constant 128 : index
    %21 = vector.load %arg3[%c0_18, %c128] : memref<8x256xf32, #tpu.memory_space<vmem>>, vector<8x128xf32>
    %c0_19 = arith.constant 0 : index
    %c128_20 = arith.constant 128 : index
    %22 = vector.load %arg4[%c0_19, %c128_20] : memref<8x256xf32, #tpu.memory_space<vmem>>, vector<8x128xf32>
    %c0_21 = arith.constant 0 : index
    %c0_22 = arith.constant 0 : index
    %23 = vector.load %arg6[%c0_21, %c0_22] : memref<8x1xf32, #tpu.memory_space<vmem>>, vector<8x1xf32>
    %cst_23 = arith.constant dense<0.000000e+00> : vector<8xf32>
    %24 = vector.multi_reduction <add>, %22, %cst_23 [1] : vector<8x128xf32> to vector<8xf32>
    %25 = vector.shape_cast %24 : vector<8xf32> to vector<8x1xf32>
    %26 = arith.addf %23, %25 : vector<8x1xf32>
    %c0_24 = arith.constant 0 : index
    %c0_25 = arith.constant 0 : index
    %27 = vector.load %arg6[%c0_24, %c0_25] : memref<8x1xf32, #tpu.memory_space<vmem>>, vector<8x1xf32>
    tpu.vector_store %arg6[%c0_24, %c0_25], %26 {strides = array<i32>} : memref<8x1xf32, #tpu.memory_space<vmem>>, vector<8x1xf32>,
    %c0_26 = arith.constant 0 : index
    %c0_27 = arith.constant 0 : index
    %28 = vector.load %arg7[%c0_26, %c0_27] : memref<8x1xf32, #tpu.memory_space<vmem>>, vector<8x1xf32>
    %29 = arith.mulf %22, %21 : vector<8x128xf32>
    %cst_28 = arith.constant dense<0.000000e+00> : vector<8xf32>
    %30 = vector.multi_reduction <add>, %29, %cst_28 [1] : vector<8x128xf32> to vector<8xf32>
    %31 = vector.shape_cast %30 : vector<8xf32> to vector<8x1xf32>
    %32 = arith.addf %28, %31 : vector<8x1xf32>
    %c0_29 = arith.constant 0 : index
    %c0_30 = arith.constant 0 : index
    %33 = vector.load %arg7[%c0_29, %c0_30] : memref<8x1xf32, #tpu.memory_space<vmem>>, vector<8x1xf32>
    tpu.vector_store %arg7[%c0_29, %c0_30], %32 {strides = array<i32>} : memref<8x1xf32, #tpu.memory_space<vmem>>, vector<8x1xf32>,
    %c0_31 = arith.constant 0 : index
    %c0_32 = arith.constant 0 : index
    %34 = vector.load %arg8[%c0_31, %c0_32] : memref<8x1xf32, #tpu.memory_space<vmem>>, vector<8x1xf32>
    %cst_33 = arith.constant dense<0.000000e+00> : vector<8xf32>
    %35 = vector.multi_reduction <add>, %21, %cst_33 [1] : vector<8x128xf32> to vector<8xf32>
    %36 = vector.shape_cast %35 : vector<8xf32> to vector<8x1xf32>
    %37 = arith.addf %34, %36 : vector<8x1xf32>
    %c0_34 = arith.constant 0 : index
    %c0_35 = arith.constant 0 : index
    %38 = vector.load %arg8[%c0_34, %c0_35] : memref<8x1xf32, #tpu.memory_space<vmem>>, vector<8x1xf32>
    tpu.vector_store %arg8[%c0_34, %c0_35], %37 {strides = array<i32>} : memref<8x1xf32, #tpu.memory_space<vmem>>, vector<8x1xf32>,
    %c0_i32_36 = arith.constant 0 : i32
    %39 = arith.cmpi eq, %arg2, %c0_i32_36 : i32
    %40 = arith.extui %39 : i1 to i32
    %c0_i32_37 = arith.constant 0 : i32
    %41 = arith.cmpi ne, %40, %c0_i32_37 : i32
    scf.if %41 {
      %c0_38 = arith.constant 0 : index
      %c0_39 = arith.constant 0 : index
      %42 = vector.load %arg6[%c0_38, %c0_39] : memref<8x1xf32, #tpu.memory_space<vmem>>, vector<8x1xf32>
      %c0_40 = arith.constant 0 : index
      %c0_41 = arith.constant 0 : index
      %c0_42 = arith.constant 0 : index
      %c0_43 = arith.constant 0 : index
      %43 = vector.load %arg5[%c0_40, %c0_41, %c0_42, %c0_43] : memref<1x1x8x3xf32, #tpu.memory_space<vmem>>, vector<1x1x8x1xf32>
      %44 = vector.shape_cast %43 : vector<1x1x8x1xf32> to vector<8x1xf32>
      %45 = vector.shape_cast %42 : vector<8x1xf32> to vector<1x1x8x1xf32>
      tpu.vector_store %arg5[%c0_40, %c0_41, %c0_42, %c0_43], %45 {strides = array<i32>} : memref<1x1x8x3xf32, #tpu.memory_space<vmem>>, vector<1x1x8x1xf32>,
      %c0_44 = arith.constant 0 : index
      %c0_45 = arith.constant 0 : index
      %46 = vector.load %arg7[%c0_44, %c0_45] : memref<8x1xf32, #tpu.memory_space<vmem>>, vector<8x1xf32>
      %c0_46 = arith.constant 0 : index
      %c0_47 = arith.constant 0 : index
      %c0_48 = arith.constant 0 : index
      %c1 = arith.constant 1 : index
      %47 = vector.load %arg5[%c0_46, %c0_47, %c0_48, %c1] : memref<1x1x8x3xf32, #tpu.memory_space<vmem>>, vector<1x1x8x1xf32>
      %48 = vector.shape_cast %47 : vector<1x1x8x1xf32> to vector<8x1xf32>
      %49 = vector.shape_cast %46 : vector<8x1xf32> to vector<1x1x8x1xf32>
      tpu.vector_store %arg5[%c0_46, %c0_47, %c0_48, %c1], %49 {strides = array<i32>} : memref<1x1x8x3xf32, #tpu.memory_space<vmem>>, vector<1x1x8x1xf32>,
      %c0_49 = arith.constant 0 : index
      %c0_50 = arith.constant 0 : index
      %50 = vector.load %arg8[%c0_49, %c0_50] : memref<8x1xf32, #tpu.memory_space<vmem>>, vector<8x1xf32>
      %c0_51 = arith.constant 0 : index
      %c0_52 = arith.constant 0 : index
      %c0_53 = arith.constant 0 : index
      %c2 = arith.constant 2 : index
      %51 = vector.load %arg5[%c0_51, %c0_52, %c0_53, %c2] : memref<1x1x8x3xf32, #tpu.memory_space<vmem>>, vector<1x1x8x1xf32>
      %52 = vector.shape_cast %51 : vector<1x1x8x1xf32> to vector<8x1xf32>
      %53 = vector.shape_cast %50 : vector<8x1xf32> to vector<1x1x8x1xf32>
      tpu.vector_store %arg5[%c0_51, %c0_52, %c0_53, %c2], %53 {strides = array<i32>} : memref<1x1x8x3xf32, #tpu.memory_space<vmem>>, vector<1x1x8x1xf32>,
    } else {
    }
    return
  }
  func.func @transform_0(%arg0: i32, %arg1: i32, %arg2: i32) -> (i32, i32) {
    %c1_i32 = arith.constant 1 : i32
    %0 = arith.muli %arg1, %c1_i32 : i32
    %1 = arith.addi %0, %arg2 : i32
    %c0_i32 = arith.constant 0 : i32
    %2 = arith.minsi %1, %c0_i32 : i32
    %c0_i32_0 = arith.constant 0 : i32
    return %arg0, %2 : i32, i32
  }
  func.func @transform_1(%arg0: i32, %arg1: i32, %arg2: i32) -> (i32, i32) {
    %c1_i32 = arith.constant 1 : i32
    %0 = arith.muli %arg1, %c1_i32 : i32
    %1 = arith.addi %0, %arg2 : i32
    %c0_i32 = arith.constant 0 : i32
    %2 = arith.minsi %1, %c0_i32 : i32
    %c0_i32_0 = arith.constant 0 : i32
    return %arg0, %2 : i32, i32
  }
  func.func @transform_2(%arg0: i32, %arg1: i32, %arg2: i32) -> (i32, i32, i32, i32) {
    %c0_i32 = arith.constant 0 : i32
    %c0_i32_0 = arith.constant 0 : i32
    %c0_i32_1 = arith.constant 0 : i32
    return %arg0, %arg1, %c0_i32, %c0_i32_0 : i32, i32, i32, i32
  }
}

</mosaic_0001>

<llo_original>
// kernel: generalized_dice_loss.1
$region0: #{generalized_dice_loss.1}
  #allocation0 [shape = 'u32[]', space=smem, size = 0x4, offset = 0x4, fixed_abs, tag = 'smem constant byte address 0x4 - core index']
  #allocation1 [shape = 'u32[144,128]{1,0:T(1,128)}', space=vmem, size = 0x12000, scoped, tag = 'internal scratch']
  #allocation2 [shape = 'f32[8,1]{1,0:T(8,128)}', space=vmem, size = 0x1000, scoped, tag = 'scratch operand']
  #allocation3 [shape = 'f32[8,1]{1,0:T(8,128)}', space=vmem, size = 0x1000, scoped, tag = 'scratch operand']
  #allocation4 [shape = 'f32[8,1]{1,0:T(8,128)}', space=vmem, size = 0x1000, scoped, tag = 'scratch operand']
  %s0 = inlined_call_operand.vmem [shape: f32[8,256], index: 0, kind: input, shape index: {}]
  %s1 = inlined_call_operand.vmem [shape: f32[8,256], index: 1, kind: input, shape index: {}]
  %s2 = inlined_call_operand.vmem [shape: f32[1,1,8,3], index: 2, kind: output, shape index: {}]
  %s3 = sld [smem:[#allocation0]]
  $region26: #{generalized_dice_loss.1} parent=0
    _
  %s5 = ssub.s32 1, %s3
  %s6 = scalar_select 0, %s5, %s3
  // Predicated region
  $region2: #{generalized_dice_loss.1} parent=0 // pred_check
    _
  $region3: #{generalized_dice_loss.1} parent=0 // pred_check_branch
    %8 = sbr.rel (0) target = $region5
  $region4: #{generalized_dice_loss.1} parent=0 // pred_region
    %s9 = sadd.s32 0, 0
    %p10 = scmp.lt.s32.totalorder %s9, 0
    %s11 = scalar_select %p10, %s9, 0
    %s12 = smul.u32 2, %s11
    %p13 = scmp.lt.s32.totalorder %s12, 1
    %s14 = scalar_select %p13, %s12, 1
    %s15 = smul.addr %s14, 8
    %s16 = scalar_lea.vmem %s0, %s15
    %s17 = sadd.s32 0, 0
    %p18 = scmp.lt.s32.totalorder %s17, 0
    %s19 = scalar_select %p18, %s17, 0
    %s20 = smul.u32 2, %s19
  $region5: #{generalized_dice_loss.1} parent=0 // pred_fallthru
    _
  // Predicated region
  $region6: #{generalized_dice_loss.1} parent=0 // pred_check
    _
  $region7: #{generalized_dice_loss.1} parent=0 // pred_check_branch
    %22 = sbr.rel (0) target = $region9
  $region8: #{generalized_dice_loss.1} parent=0 // pred_region
    %s23 = sadd.s32 0, 0
    %p24 = scmp.lt.s32.totalorder %s23, 0
    %s25 = scalar_select %p24, %s23, 0
    %s26 = smul.u32 2, %s25
    %p27 = scmp.lt.s32.totalorder %s26, 1
    %s28 = scalar_select %p27, %s26, 1
    %s29 = smul.addr %s28, 8
    %s30 = scalar_lea.vmem %s1, %s29
    %s31 = sadd.s32 0, 0
    %p32 = scmp.lt.s32.totalorder %s31, 0
    %s33 = scalar_select %p32, %s31, 0
    %s34 = smul.u32 2, %s33
  $region9: #{generalized_dice_loss.1} parent=0 // pred_fallthru
    _
  %s35 = sadd.s32 0, 0
  %p36 = scmp.lt.s32.totalorder %s35, 0
  %s37 = scalar_select %p36, %s35, 0
  %s38 = smul.u32 2, %s37
  %p39 = scmp.lt.s32.totalorder %s38, 1
  %s40 = scalar_select %p39, %s38, 1
  %s41 = smul.addr %s40, 8
  %s42 = scalar_lea.vmem %s0, %s41
  %s43 = sadd.s32 0, 0
  %p44 = scmp.lt.s32.totalorder %s43, 0
  %s45 = scalar_select %p44, %s43, 0
  %s46 = smul.u32 2, %s45
  %p47 = scmp.lt.s32.totalorder %s46, 1
  %s48 = scalar_select %p47, %s46, 1
  %s49 = smul.addr %s48, 8
  %s50 = scalar_lea.vmem %s1, %s49
  %s51 = sadd.s32 0, 0
  %p52 = scmp.lt.s32.totalorder %s51, 0
  %s53 = scalar_select %p52, %s51, 0
  %s54 = smul.u32 2, %s53
  %p55 = scmp.lt.s32.totalorder %s54, 1
  %s56 = scalar_select %p55, %s54, 1
  %s57 = smul.addr %s56, 8
  %s58 = scalar_lea.vmem %s0, %s57
  %s59 = sadd.s32 0, 0
  %p60 = scmp.lt.s32.totalorder %s59, 0
  %s61 = scalar_select %p60, %s59, 0
  %s62 = smul.u32 2, %s61
  %s63 = sadd.s32 0, 0
  %p64 = scmp.lt.s32.totalorder %s63, 0
  %s65 = scalar_select %p64, %s63, 0
  %s66 = smul.u32 2, %s65
  %p67 = scmp.lt.s32.totalorder %s66, 1
  %s68 = scalar_select %p67, %s66, 1
  %s69 = smul.addr %s68, 8
  %s70 = scalar_lea.vmem %s1, %s69
  %s71 = sadd.s32 0, 0
  %p72 = scmp.lt.s32.totalorder %s71, 0
  %s73 = scalar_select %p72, %s71, 0
  %s74 = smul.u32 2, %s73
  %p75 = scmp.eq.s32.totalorder 0, 0
  // Predicated region
  $region10: #{generalized_dice_loss.1} parent=0 // pred_check
    %p76 = pneg %p75
  $region11: #{generalized_dice_loss.1} parent=0 // pred_check_branch
    %78 = sbr.rel (%p76) target = $region13
  $region12: #{generalized_dice_loss.1} parent=0 // pred_region
    %vm79 = vcmask 7168
    %80 = vst.msk [vmem:[#allocation2] sm:$0xff] %vm79, 0.0
    %81 = vst.msk [vmem:[#allocation3] sm:$0xff] %vm79, 0.0
    %82 = vst.msk [vmem:[#allocation4] sm:$0xff] %vm79, 0.0
  $region13: #{generalized_dice_loss.1} parent=0 // pred_fallthru
    _
  %v83 = vld [vmem:[%s58] sm:$0xff]
  %v84 = vld [vmem:[%s70] sm:$0xff]
  %v85 = vld [vmem:[#allocation2] sm:$0xff]
  %86 = vadd.xlane.f32.xlu0 %v84
  %v87 = vpop.xlane.xlu0 %86
  %v88 = vadd.f32 %v85, %v87
  %vm89 = vcmask 7168
  %90 = vst.msk [vmem:[#allocation2] sm:$0xff] %vm89, %v88
  %v91 = vld [vmem:[#allocation3] sm:$0xff]
  %v92 = vmul.f32 %v84, %v83
  %93 = vadd.xlane.f32.xlu0 %v92
  %v94 = vpop.xlane.xlu0 %93
  %v95 = vadd.f32 %v91, %v94
  %96 = vst.msk [vmem:[#allocation3] sm:$0xff] %vm89, %v95
  %v97 = vld [vmem:[#allocation4] sm:$0xff]
  %98 = vadd.xlane.f32.xlu0 %v83
  %v99 = vpop.xlane.xlu0 %98
  %v100 = vadd.f32 %v97, %v99
  %101 = vst.msk [vmem:[#allocation4] sm:$0xff] %vm89, %v100
  %v102 = vld [vmem:[%s58 + $0x8] sm:$0xff]
  %v103 = vld [vmem:[%s70 + $0x8] sm:$0xff]
  %v104 = vld [vmem:[#allocation2] sm:$0xff]
  %105 = vadd.xlane.f32.xlu0 %v103
  %v106 = vpop.xlane.xlu0 %105
  %v107 = vadd.f32 %v104, %v106
  %108 = vst.msk [vmem:[#allocation2] sm:$0xff] %vm89, %v107
  %v109 = vld [vmem:[#allocation3] sm:$0xff]
  %v110 = vmul.f32 %v103, %v102
  %111 = vadd.xlane.f32.xlu0 %v110
  %v112 = vpop.xlane.xlu0 %111
  %v113 = vadd.f32 %v109, %v112
  %114 = vst.msk [vmem:[#allocation3] sm:$0xff] %vm89, %v113
  %v115 = vld [vmem:[#allocation4] sm:$0xff]
  %116 = vadd.xlane.f32.xlu0 %v102
  %v117 = vpop.xlane.xlu0 %116
  %v118 = vadd.f32 %v115, %v117
  %119 = vst.msk [vmem:[#allocation4] sm:$0xff] %vm89, %v118
  // Predicated region
  $region14: #{generalized_dice_loss.1} parent=0 // pred_check
    %p120 = pneg %p75
  $region15: #{generalized_dice_loss.1} parent=0 // pred_check_branch
    %122 = sbr.rel (%p120) target = $region17
  $region16: #{generalized_dice_loss.1} parent=0 // pred_region
    %v123 = vld [vmem:[#allocation2] sm:$0xff]
    %124 = vst.msk [vmem:[%s2] sm:$0xff] %vm89, %v123
    %v125 = vld [vmem:[#allocation3] sm:$0xff]
    %127 = vrot.lane.b32.xlu0 %v125, 1
    %v128 = vpop.permute.xlu0 %127
    %vm130 = vcmask 15368
    %131 = vst.msk [vmem:[%s2] sm:$0xff] %vm130, %v128
    %v132 = vld [vmem:[#allocation4] sm:$0xff]
    %134 = vrot.lane.b32.xlu0 %v132, 2
    %v135 = vpop.permute.xlu0 %134
    %vm137 = vcmask 23568
    %138 = vst.msk [vmem:[%s2] sm:$0xff] %vm137, %v135
  $region17: #{generalized_dice_loss.1} parent=0 // pred_fallthru
    _
  // Predicated region
  $region18: #{generalized_dice_loss.1} parent=0 // pred_check
    _
  $region19: #{generalized_dice_loss.1} parent=0 // pred_check_branch
    %140 = sbr.rel (0) target = $region21
  $region20: #{generalized_dice_loss.1} parent=0 // pred_region
    _
  $region21: #{generalized_dice_loss.1} parent=0 // pred_fallthru
    _
  // Predicated region
  $region22: #{generalized_dice_loss.1} parent=0 // pred_check
    _
  $region23: #{generalized_dice_loss.1} parent=0 // pred_check_branch
    %142 = sbr.rel (0) target = $region25
  $region24: #{generalized_dice_loss.1} parent=0 // pred_region
    _
  $region25: #{generalized_dice_loss.1} parent=0 // pred_fallthru
    _

</llo_original>
